<compile_context>
chip_gen: v7x
topology: tpu7x:2x2x1
jax: 0.10.0
libtpu: 0.0.40
codegen_flags: <defaults>
</compile_context>

<pallas_src>
import jax
import jax.numpy as jnp
from jax.experimental import pallas as pl
from jax.experimental.pallas import tpu as pltpu


def _round_up(x, m):
    return ((x + m - 1) // m) * m


def _mlp_kernel(x_ref, w1_ref, b1_ref, w2_ref, b2_ref, w3_ref, b3_ref,
                w4_ref, b4_ref, o_ref):
    """Fused 4-layer MLP forward for one batch tile.

    x is f32 in VMEM and cast to the matmul dtype (w*_ref.dtype, bf16 by
    default) in vregs; all matmuls accumulate in f32 on the MXU; bias add and
    ReLU run in f32 on the VPU.  Weights/biases are resident in VMEM across
    the whole grid, so per-step traffic is just the x tile in and the
    narrow (output_dim-wide) output tile out.
    """
    mm_dtype = w1_ref.dtype

    h = jnp.dot(x_ref[...].astype(mm_dtype), w1_ref[...],
                preferred_element_type=jnp.float32) + b1_ref[...]
    h = jnp.maximum(h, 0.0)

    h = jnp.dot(h.astype(mm_dtype), w2_ref[...],
                preferred_element_type=jnp.float32) + b2_ref[...]
    h = jnp.maximum(h, 0.0)

    h = jnp.dot(h.astype(mm_dtype), w3_ref[...],
                preferred_element_type=jnp.float32) + b3_ref[...]
    h = jnp.maximum(h, 0.0)

    out = jnp.dot(h.astype(mm_dtype), w4_ref[...],
                  preferred_element_type=jnp.float32) + b4_ref[...]
    o_ref[...] = out.astype(o_ref.dtype)


def view_time_predictor_forward(x, params, *, batch_tile=None,
                                matmul_dtype=jnp.bfloat16):
    """Run the fused MLP kernel.

    x:            [B, input_dim] float32
    params:       dict with w1..w4 ([in, out], f32) and b1..b4 ([1, out], f32)
    batch_tile:   rows per grid step; default = clamp(ceil(B/2) rounded up to
                  8, [8, 2048]) so the grid has >= 2 steps for non-tiny B
                  (v7x TensorCore sharding) without wasting rows for small B.
    matmul_dtype: dtype of MXU operands (bf16 default; pass jnp.float32 for a
                  bit-strict f32 path).
    returns:      [B, output_dim] float32
    """
    B, input_dim = x.shape
    hidden_dim = params["w1"].shape[1]
    output_dim = params["w4"].shape[1]

    if batch_tile is None:
        # Sublane multiple (8 for the f32 x tile); ~ceil(B/2) so grid >= 2
        # when B > one tile; cap at 2048 rows/step.
        batch_tile = max(8, min(2048, _round_up(-(-B // 2), 8)))

    grid = (pl.cdiv(B, batch_tile),)

    # Weights are tiny (~66 KB at bf16) -> cast once in the wrapper.  x stays
    # f32: the cast happens in-kernel, avoiding an extra HBM pass over x.
    w1 = params["w1"].astype(matmul_dtype)
    w2 = params["w2"].astype(matmul_dtype)
    w3 = params["w3"].astype(matmul_dtype)
    w4 = params["w4"].astype(matmul_dtype)
    b1 = params["b1"].astype(jnp.float32)
    b2 = params["b2"].astype(jnp.float32)
    b3 = params["b3"].astype(jnp.float32)
    b4 = params["b4"].astype(jnp.float32)

    def resident(arr):
        # Constant index_map -> DMA'd once, resident in VMEM for all steps.
        return pl.BlockSpec(arr.shape, lambda i: (0, 0))

    w_itemsize = jnp.dtype(matmul_dtype).itemsize
    flops = 2 * B * (input_dim * hidden_dim
                     + 2 * hidden_dim * hidden_dim
                     + hidden_dim * output_dim)
    bytes_accessed = (B * input_dim * 4
                      + B * output_dim * 4
                      + (w1.size + w2.size + w3.size + w4.size) * w_itemsize
                      + (b1.size + b2.size + b3.size + b4.size) * 4)

    out = pl.pallas_call(
        _mlp_kernel,
        out_shape=jax.ShapeDtypeStruct((B, output_dim), jnp.float32),
        grid_spec=pl.GridSpec(
            grid=grid,
            in_specs=[
                pl.BlockSpec((batch_tile, input_dim), lambda i: (i, 0)),
                resident(w1), resident(b1),
                resident(w2), resident(b2),
                resident(w3), resident(b3),
                resident(w4), resident(b4),
            ],
            # Last block dim == full array dim (output_dim) -> legal narrow
            # block; only the real columns are ever written back to HBM.
            out_specs=pl.BlockSpec((batch_tile, output_dim), lambda i: (i, 0)),
        ),
        compiler_params=pltpu.CompilerParams(
            dimension_semantics=("parallel",)),
        cost_estimate=pl.CostEstimate(
            flops=flops, transcendentals=0, bytes_accessed=bytes_accessed),
    )(x.astype(jnp.float32), w1, b1, w2, b2, w3, b3, w4, b4)

    return out


def init_params(key, input_dim, hidden_dim, output_dim):
    """Deterministic synthetic parameters (PyTorch-style uniform fan-in init)."""
    dims = [(input_dim, hidden_dim),
            (hidden_dim, hidden_dim),
            (hidden_dim, hidden_dim),
            (hidden_dim, output_dim)]
    params = {}
    keys = jax.random.split(key, 2 * len(dims))
    for layer, (fan_in, fan_out) in enumerate(dims, start=1):
        bound = 1.0 / jnp.sqrt(jnp.float32(fan_in))
        wk, bk = keys[2 * (layer - 1)], keys[2 * (layer - 1) + 1]
        params[f"w{layer}"] = jax.random.uniform(
            wk, (fan_in, fan_out), jnp.float32, -bound, bound)
        params[f"b{layer}"] = jax.random.uniform(
            bk, (1, fan_out), jnp.float32, -bound, bound)
    return params


def reference_forward(x, params, matmul_dtype=jnp.float32):
    """Pure-JAX reference matching the PyTorch nn.Sequential semantics.

    matmul_dtype lets us mimic the kernel's bf16-operand / f32-accumulate path
    for tight validation.
    """
    def dense(h, w, b):
        return jnp.dot(h.astype(matmul_dtype), w.astype(matmul_dtype),
                       preferred_element_type=jnp.float32) + b
    h = jnp.maximum(dense(x, params["w1"], params["b1"]), 0.0)
    h = jnp.maximum(dense(h, params["w2"], params["b2"]), 0.0)
    h = jnp.maximum(dense(h, params["w3"], params["b3"]), 0.0)
    return dense(h, params["w4"], params["b4"])


if __name__ == "__main__":
    # Small shapes consistent with the module: a batch of flat feature vectors.
    batch = 8
    input_dim = 32
    hidden_dim = 128
    output_dim = 4

    key = jax.random.PRNGKey(0)
    pkey, xkey, xkey2 = jax.random.split(key, 3)
    params = init_params(pkey, input_dim, hidden_dim, output_dim)
    x = jax.random.normal(xkey, (batch, input_dim), jnp.float32)

    # Default fast path: bf16 MXU operands, f32 accumulation.
    y_bf16 = jax.block_until_ready(view_time_predictor_forward(x, params))
    assert y_bf16.shape == (batch, output_dim)

    # Validate bf16 kernel against a bf16-mimicking reference (tight) and the
    # exact f32 reference (loose, bf16 rounding of operands).
    y_ref_bf16 = reference_forward(x, params, matmul_dtype=jnp.bfloat16)
    y_ref_f32 = reference_forward(x, params, matmul_dtype=jnp.float32)
    assert jnp.allclose(y_bf16, y_ref_bf16, atol=2e-3, rtol=2e-3), \
        "bf16 kernel mismatch vs bf16 reference"
    assert jnp.allclose(y_bf16, y_ref_f32, atol=5e-2, rtol=5e-2), \
        "bf16 kernel too far from f32 reference"

    # Strict semantics check: f32 operand path must match the f32 reference.
    y_f32 = jax.block_until_ready(
        view_time_predictor_forward(x, params, matmul_dtype=jnp.float32))
    assert jnp.allclose(y_f32, y_ref_f32, atol=1e-4, rtol=1e-4), \
        "f32 kernel mismatch vs f32 reference"

    # Ragged batch (B=37): exercises grid >= 2 and the masked partial last
    # block (no wrapper-side padding of x).
    x2 = jax.random.normal(xkey2, (37, input_dim), jnp.float32)
    y2 = jax.block_until_ready(view_time_predictor_forward(x2, params))
    assert y2.shape == (37, output_dim)
    y2_ref = reference_forward(x2, params, matmul_dtype=jnp.bfloat16)
    assert jnp.allclose(y2, y2_ref, atol=2e-3, rtol=2e-3), \
        "ragged-batch kernel mismatch vs bf16 reference"

    print("KERNEL_OK")
</pallas_src>

<mosaic_0001>
module attributes {stable_mosaic.version = 11 : i64} {
  func.func @_mlp_kernel(%arg0: i32, %arg1: memref<8x32xf32, #tpu.memory_space<vmem>>, %arg2: memref<32x128xbf16, #tpu.memory_space<vmem>>, %arg3: memref<1x128xf32, #tpu.memory_space<vmem>>, %arg4: memref<128x128xbf16, #tpu.memory_space<vmem>>, %arg5: memref<1x128xf32, #tpu.memory_space<vmem>>, %arg6: memref<128x128xbf16, #tpu.memory_space<vmem>>, %arg7: memref<1x128xf32, #tpu.memory_space<vmem>>, %arg8: memref<128x4xbf16, #tpu.memory_space<vmem>>, %arg9: memref<1x4xf32, #tpu.memory_space<vmem>>, %arg10: memref<8x4xf32, #tpu.memory_space<vmem>>) attributes {dimension_semantics = [#tpu.dimension_semantics<parallel>], iteration_bounds = array<i64: 1>, scalar_prefetch = 0 : i64, scratch_operands = 0 : i64, tpu.core_type = #tpu.core_type<tc>, window_params = [{transform_indices = @transform_0, window_bounds = array<i64: 8, 32>}, {pipeline_mode = #tpu.pipeline_mode<synchronous>, transform_indices = @transform_1, window_bounds = array<i64: 32, 128>}, {pipeline_mode = #tpu.pipeline_mode<synchronous>, transform_indices = @transform_2, window_bounds = array<i64: 1, 128>}, {pipeline_mode = #tpu.pipeline_mode<synchronous>, transform_indices = @transform_3, window_bounds = array<i64: 128, 128>}, {pipeline_mode = #tpu.pipeline_mode<synchronous>, transform_indices = @transform_4, window_bounds = array<i64: 1, 128>}, {pipeline_mode = #tpu.pipeline_mode<synchronous>, transform_indices = @transform_5, window_bounds = array<i64: 128, 128>}, {pipeline_mode = #tpu.pipeline_mode<synchronous>, transform_indices = @transform_6, window_bounds = array<i64: 1, 128>}, {pipeline_mode = #tpu.pipeline_mode<synchronous>, transform_indices = @transform_7, window_bounds = array<i64: 128, 4>}, {pipeline_mode = #tpu.pipeline_mode<synchronous>, transform_indices = @transform_8, window_bounds = array<i64: 1, 4>}, {transform_indices = @transform_9, window_bounds = array<i64: 8, 4>}]} {
    %c0 = arith.constant 0 : index
    %c0_0 = arith.constant 0 : index
    %0 = vector.load %arg1[%c0, %c0_0] : memref<8x32xf32, #tpu.memory_space<vmem>>, vector<8x32xf32>
    %1 = arith.truncf %0 : vector<8x32xf32> to vector<8x32xbf16>
    %c0_1 = arith.constant 0 : index
    %c0_2 = arith.constant 0 : index
    %2 = vector.load %arg2[%c0_1, %c0_2] : memref<32x128xbf16, #tpu.memory_space<vmem>>, vector<32x128xbf16>
    %cst = arith.constant dense<0.000000e+00> : vector<8x128xf32>
    %3 = tpu.matmul %1, %2, %cst {dimension_numbers = #tpu.dot_dimension_numbers<[1], [0], [0], [1], [0, 0, 1, 1], [], []>} : vector<8x32xbf16>, vector<32x128xbf16>, vector<8x128xf32> -> vector<8x128xf32>
    %c0_3 = arith.constant 0 : index
    %c0_4 = arith.constant 0 : index
    %4 = vector.load %arg3[%c0_3, %c0_4] : memref<1x128xf32, #tpu.memory_space<vmem>>, vector<1x128xf32>
    %5 = vector.broadcast %4 : vector<1x128xf32> to vector<8x128xf32>
    %6 = arith.addf %3, %5 : vector<8x128xf32>
    %cst_5 = arith.constant 0.000000e+00 : f32
    %7 = vector.broadcast %cst_5 : f32 to vector<8x128xf32>
    %8 = arith.maximumf %6, %7 : vector<8x128xf32>
    %9 = arith.truncf %8 : vector<8x128xf32> to vector<8x128xbf16>
    %c0_6 = arith.constant 0 : index
    %c0_7 = arith.constant 0 : index
    %10 = vector.load %arg4[%c0_6, %c0_7] : memref<128x128xbf16, #tpu.memory_space<vmem>>, vector<128x128xbf16>
    %cst_8 = arith.constant dense<0.000000e+00> : vector<8x128xf32>
    %11 = tpu.matmul %9, %10, %cst_8 {dimension_numbers = #tpu.dot_dimension_numbers<[1], [0], [0], [1], [0, 0, 1, 1], [], []>} : vector<8x128xbf16>, vector<128x128xbf16>, vector<8x128xf32> -> vector<8x128xf32>
    %c0_9 = arith.constant 0 : index
    %c0_10 = arith.constant 0 : index
    %12 = vector.load %arg5[%c0_9, %c0_10] : memref<1x128xf32, #tpu.memory_space<vmem>>, vector<1x128xf32>
    %13 = vector.broadcast %12 : vector<1x128xf32> to vector<8x128xf32>
    %14 = arith.addf %11, %13 : vector<8x128xf32>
    %cst_11 = arith.constant 0.000000e+00 : f32
    %15 = vector.broadcast %cst_11 : f32 to vector<8x128xf32>
    %16 = arith.maximumf %14, %15 : vector<8x128xf32>
    %17 = arith.truncf %16 : vector<8x128xf32> to vector<8x128xbf16>
    %c0_12 = arith.constant 0 : index
    %c0_13 = arith.constant 0 : index
    %18 = vector.load %arg6[%c0_12, %c0_13] : memref<128x128xbf16, #tpu.memory_space<vmem>>, vector<128x128xbf16>
    %cst_14 = arith.constant dense<0.000000e+00> : vector<8x128xf32>
    %19 = tpu.matmul %17, %18, %cst_14 {dimension_numbers = #tpu.dot_dimension_numbers<[1], [0], [0], [1], [0, 0, 1, 1], [], []>} : vector<8x128xbf16>, vector<128x128xbf16>, vector<8x128xf32> -> vector<8x128xf32>
    %c0_15 = arith.constant 0 : index
    %c0_16 = arith.constant 0 : index
    %20 = vector.load %arg7[%c0_15, %c0_16] : memref<1x128xf32, #tpu.memory_space<vmem>>, vector<1x128xf32>
    %21 = vector.broadcast %20 : vector<1x128xf32> to vector<8x128xf32>
    %22 = arith.addf %19, %21 : vector<8x128xf32>
    %cst_17 = arith.constant 0.000000e+00 : f32
    %23 = vector.broadcast %cst_17 : f32 to vector<8x128xf32>
    %24 = arith.maximumf %22, %23 : vector<8x128xf32>
    %25 = arith.truncf %24 : vector<8x128xf32> to vector<8x128xbf16>
    %c0_18 = arith.constant 0 : index
    %c0_19 = arith.constant 0 : index
    %26 = vector.load %arg8[%c0_18, %c0_19] : memref<128x4xbf16, #tpu.memory_space<vmem>>, vector<128x4xbf16>
    %cst_20 = arith.constant dense<0.000000e+00> : vector<8x4xf32>
    %27 = tpu.matmul %25, %26, %cst_20 {dimension_numbers = #tpu.dot_dimension_numbers<[1], [0], [0], [1], [0, 0, 1, 1], [], []>} : vector<8x128xbf16>, vector<128x4xbf16>, vector<8x4xf32> -> vector<8x4xf32>
    %c0_21 = arith.constant 0 : index
    %c0_22 = arith.constant 0 : index
    %28 = vector.load %arg9[%c0_21, %c0_22] : memref<1x4xf32, #tpu.memory_space<vmem>>, vector<1x4xf32>
    %29 = vector.broadcast %28 : vector<1x4xf32> to vector<8x4xf32>
    %30 = arith.addf %27, %29 : vector<8x4xf32>
    %c0_23 = arith.constant 0 : index
    %c0_24 = arith.constant 0 : index
    %31 = vector.load %arg10[%c0_23, %c0_24] : memref<8x4xf32, #tpu.memory_space<vmem>>, vector<8x4xf32>
    tpu.vector_store %arg10[%c0_23, %c0_24], %30 {strides = array<i32>} : memref<8x4xf32, #tpu.memory_space<vmem>>, vector<8x4xf32>,
    return
  }
  func.func @transform_0(%arg0: i32) -> (i32, i32) {
    %c0_i32 = arith.constant 0 : i32
    %c0_i32_0 = arith.constant 0 : i32
    return %arg0, %c0_i32 : i32, i32
  }
  func.func @transform_1(%arg0: i32) -> (i32, i32) {
    %c0_i32 = arith.constant 0 : i32
    %c0_i32_0 = arith.constant 0 : i32
    %c0_i32_1 = arith.constant 0 : i32
    return %c0_i32, %c0_i32_0 : i32, i32
  }
  func.func @transform_2(%arg0: i32) -> (i32, i32) {
    %c0_i32 = arith.constant 0 : i32
    %c0_i32_0 = arith.constant 0 : i32
    %c0_i32_1 = arith.constant 0 : i32
    return %c0_i32, %c0_i32_0 : i32, i32
  }
  func.func @transform_3(%arg0: i32) -> (i32, i32) {
    %c0_i32 = arith.constant 0 : i32
    %c0_i32_0 = arith.constant 0 : i32
    %c0_i32_1 = arith.constant 0 : i32
    return %c0_i32, %c0_i32_0 : i32, i32
  }
  func.func @transform_4(%arg0: i32) -> (i32, i32) {
    %c0_i32 = arith.constant 0 : i32
    %c0_i32_0 = arith.constant 0 : i32
    %c0_i32_1 = arith.constant 0 : i32
    return %c0_i32, %c0_i32_0 : i32, i32
  }
  func.func @transform_5(%arg0: i32) -> (i32, i32) {
    %c0_i32 = arith.constant 0 : i32
    %c0_i32_0 = arith.constant 0 : i32
    %c0_i32_1 = arith.constant 0 : i32
    return %c0_i32, %c0_i32_0 : i32, i32
  }
  func.func @transform_6(%arg0: i32) -> (i32, i32) {
    %c0_i32 = arith.constant 0 : i32
    %c0_i32_0 = arith.constant 0 : i32
    %c0_i32_1 = arith.constant 0 : i32
    return %c0_i32, %c0_i32_0 : i32, i32
  }
  func.func @transform_7(%arg0: i32) -> (i32, i32) {
    %c0_i32 = arith.constant 0 : i32
    %c0_i32_0 = arith.constant 0 : i32
    %c0_i32_1 = arith.constant 0 : i32
    return %c0_i32, %c0_i32_0 : i32, i32
  }
  func.func @transform_8(%arg0: i32) -> (i32, i32) {
    %c0_i32 = arith.constant 0 : i32
    %c0_i32_0 = arith.constant 0 : i32
    %c0_i32_1 = arith.constant 0 : i32
    return %c0_i32, %c0_i32_0 : i32, i32
  }
  func.func @transform_9(%arg0: i32) -> (i32, i32) {
    %c0_i32 = arith.constant 0 : i32
    %c0_i32_0 = arith.constant 0 : i32
    return %arg0, %c0_i32 : i32, i32
  }
}

</mosaic_0001>

<llo_original>
// kernel: tpu_custom_call.1
$region0: #{tpu_custom_call.1}
  #allocation0 [shape = 'u32[]', space=smem, size = 0x4, offset = 0x4, fixed_abs, tag = 'smem constant byte address 0x4 - core index']
  #allocation1 [shape = 'u32[144,128]{1,0:T(1,128)}', space=vmem, size = 0x12000, scoped, tag = 'internal scratch']
  %s0 = inlined_call_operand.vmem [shape: f32[8,32], index: 0, kind: input, shape index: {}]
  %s1 = inlined_call_operand.hbm [shape: bf16[32,128], index: 1, kind: input, shape index: {}]
  %s2 = inlined_call_operand.vmem [shape: f32[1,128], index: 2, kind: input, shape index: {}]
  %s3 = inlined_call_operand.vmem [shape: bf16[128,128], index: 3, kind: input, shape index: {}]
  %s4 = inlined_call_operand.vmem [shape: f32[1,128], index: 4, kind: input, shape index: {}]
  %s5 = inlined_call_operand.hbm [shape: bf16[128,128], index: 5, kind: input, shape index: {}]
  %s6 = inlined_call_operand.vmem [shape: f32[1,128], index: 6, kind: input, shape index: {}]
  %s7 = inlined_call_operand.vmem [shape: bf16[128,4], index: 7, kind: input, shape index: {}]
  %s8 = inlined_call_operand.vmem [shape: f32[1,4], index: 8, kind: input, shape index: {}]
  %s9 = inlined_call_operand.vmem [shape: f32[8,4], index: 9, kind: output, shape index: {}]
  %s10 = sld [smem:[#allocation0]]
  $region54: #{tpu_custom_call.1} parent=0
    _
  %s12 = ssub.s32 1, %s10
  %s13 = scalar_select 0, %s12, %s10
  $region1: #{tpu_custom_call.1} parent=0
    #allocation2 [shape = 'u8[8192]{0}', space=vmem, size = 0x2000, scoped, tag = 'input window, operand 1, single buffered']
    #allocation3 [shape = 's32[1]{0}', space=sflag, size = 0x4, scoped, tag = 'scoped memory for tpu_custom_call.1']
    #allocation4 [shape = 'u8[32768]{0}', space=vmem, size = 0x8000, scoped, tag = 'input window, operand 5, single buffered']
    #allocation5 [shape = 's32[1]{0}', space=sflag, size = 0x4, scoped, tag = 'scoped memory for tpu_custom_call.1']
    %14 = vsyncpa [#allocation3], 0
    %15 = vsyncpa [#allocation5], 0
    // Predicated region
    $region2: #{tpu_custom_call.1} parent=1 // pred_check
      _
    $region3: #{tpu_custom_call.1} parent=1 // pred_check_branch
      %17 = sbr.rel (0) target = $region5
    $region4: #{tpu_custom_call.1} parent=1 // pred_region
      _
    $region5: #{tpu_custom_call.1} parent=1 // pred_fallthru
      _
    // Predicated region
    $region6: #{tpu_custom_call.1} parent=1 // pred_check
      _
    $region7: #{tpu_custom_call.1} parent=1 // pred_check_branch
      %19 = sbr.rel (0) target = $region9
    $region8: #{tpu_custom_call.1} parent=1 // pred_region
      %s21 = ssub.s32 256, 256
      %22 = vsyncadd [#allocation3], %s21
      %s23 = sshll.u32 [#allocation2], 4
      %s24 = int_to_ptr.vmem [resolvable:$true] %s23
      %29 = dma.hbm_to_vmem [thread:$0]  %s1, 256, %s24, [#allocation3], 64, 64, 4
    $region9: #{tpu_custom_call.1} parent=1 // pred_fallthru
      _
    // Predicated region
    $region10: #{tpu_custom_call.1} parent=1 // pred_check
      _
    $region11: #{tpu_custom_call.1} parent=1 // pred_check_branch
      %31 = sbr.rel (0) target = $region13
    $region12: #{tpu_custom_call.1} parent=1 // pred_region
      _
    $region13: #{tpu_custom_call.1} parent=1 // pred_fallthru
      _
    // Predicated region
    $region14: #{tpu_custom_call.1} parent=1 // pred_check
      _
    $region15: #{tpu_custom_call.1} parent=1 // pred_check_branch
      %33 = sbr.rel (0) target = $region17
    $region16: #{tpu_custom_call.1} parent=1 // pred_region
      _
    $region17: #{tpu_custom_call.1} parent=1 // pred_fallthru
      _
    // Predicated region
    $region18: #{tpu_custom_call.1} parent=1 // pred_check
      _
    $region19: #{tpu_custom_call.1} parent=1 // pred_check_branch
      %35 = sbr.rel (0) target = $region21
    $region20: #{tpu_custom_call.1} parent=1 // pred_region
      _
    $region21: #{tpu_custom_call.1} parent=1 // pred_fallthru
      _
    // Predicated region
    $region22: #{tpu_custom_call.1} parent=1 // pred_check
      _
    $region23: #{tpu_custom_call.1} parent=1 // pred_check_branch
      %37 = sbr.rel (0) target = $region25
    $region24: #{tpu_custom_call.1} parent=1 // pred_region
      %s39 = ssub.s32 1024, 1024
      %40 = vsyncadd [#allocation5], %s39
      %s41 = sshll.u32 [#allocation4], 4
      %s42 = int_to_ptr.vmem [resolvable:$true] %s41
      %47 = dma.hbm_to_vmem [thread:$0]  %s5, 1024, %s42, [#allocation5], 64, 64, 4
    $region25: #{tpu_custom_call.1} parent=1 // pred_fallthru
      _
    // Predicated region
    $region26: #{tpu_custom_call.1} parent=1 // pred_check
      _
    $region27: #{tpu_custom_call.1} parent=1 // pred_check_branch
      %49 = sbr.rel (0) target = $region29
    $region28: #{tpu_custom_call.1} parent=1 // pred_region
      _
    $region29: #{tpu_custom_call.1} parent=1 // pred_fallthru
      _
    // Predicated region
    $region30: #{tpu_custom_call.1} parent=1 // pred_check
      _
    $region31: #{tpu_custom_call.1} parent=1 // pred_check_branch
      %51 = sbr.rel (0) target = $region33
    $region32: #{tpu_custom_call.1} parent=1 // pred_region
      _
    $region33: #{tpu_custom_call.1} parent=1 // pred_fallthru
      _
    // Predicated region
    $region34: #{tpu_custom_call.1} parent=1 // pred_check
      _
    $region35: #{tpu_custom_call.1} parent=1 // pred_check_branch
      %53 = sbr.rel (0) target = $region37
    $region36: #{tpu_custom_call.1} parent=1 // pred_region
      _
    $region37: #{tpu_custom_call.1} parent=1 // pred_fallthru
      _
    // Predicated region
    $region38: #{tpu_custom_call.1} parent=1 // pred_check
      _
    $region39: #{tpu_custom_call.1} parent=1 // pred_check_branch
      %55 = sbr.rel (0) target = $region41
    $region40: #{tpu_custom_call.1} parent=1 // pred_region
      %56 = dma.done [#allocation3], 256
    $region41: #{tpu_custom_call.1} parent=1 // pred_fallthru
      _
    // Predicated region
    $region42: #{tpu_custom_call.1} parent=1 // pred_check
      _
    $region43: #{tpu_custom_call.1} parent=1 // pred_check_branch
      %58 = sbr.rel (0) target = $region45
    $region44: #{tpu_custom_call.1} parent=1 // pred_region
      %59 = dma.done [#allocation5], 1024
    $region45: #{tpu_custom_call.1} parent=1 // pred_fallthru
      _
    %v61 = vld [vmem:[%s0] sm:$0xff]
    %v62 = vpack.c.bf16 %v61, %v61
    %v63 = vld [vmem:[#allocation2] sm:$0xf]
    %v64 = vld [vmem:[#allocation2 + $0x4] sm:$0xf]
    %v65 = vld [vmem:[#allocation2 + $0x8] sm:$0xf]
    %v66 = vld [vmem:[#allocation2 + $0xc] sm:$0xf]
    %v67 = vld [vmem:[%s2] sm:$0x1]
    %v69 = vlaneseq
    %v70 = vshrl.u32 %v69, 7
    %v71 = vsub.s32 0, %v70
    %v72 = vrot.slane %v67, %v71
    %v78 = vunpack.c.l.b16 %v63
    %v79 = vunpack.c.l.b16 %v64
    %v80 = vunpack.c.l.b16 %v65
    %v81 = vunpack.c.l.b16 %v66
    %v82 = vpack.c.b16 %v79, %v78
    %v83 = vpack.c.b16 %v81, %v80
    %vm86 = vcmask 261120
    %v88 = vsel %vm86, %v62, 0
    %90 = vmatprep.subr.bf16.mxu0 0
    %91 = vmatpush1.bf16.msra.mxu0 %v82
    %92 = vmatprep.subr.bf16.mxu0 0
    %93 = vmatpush1.bf16.msra.mxu0 %v83
    %94 = vmatprep.subr.bf16.mxu0 0
    %95 = vmatpush1.bf16.msra.mxu0 0
    %96 = vmatprep.subr.bf16.mxu0 0
    %97 = vmatpush1.bf16.msra.mxu0 0
    %98 = vmatprep.subr.bf16.mxu0 0
    %99 = vmatpush1.bf16.msra.mxu0 0
    %100 = vmatprep.subr.bf16.mxu0 0
    %101 = vmatpush1.bf16.msra.mxu0 0
    %102 = vmatprep.subr.bf16.mxu0 0
    %103 = vmatpush1.bf16.msra.mxu0 0
    %104 = vmatprep.subr.bf16.mxu0 0
    %105 = vmatpush1.bf16.msra.mxu0 0
    %106 = vmatprep.subr.bf16.mxu0 0
    %107 = vmatpush1.bf16.msra.mxu0 0
    %108 = vmatprep.subr.bf16.mxu0 0
    %109 = vmatpush1.bf16.msra.mxu0 0
    %110 = vmatprep.subr.bf16.mxu0 0
    %111 = vmatpush1.bf16.msra.mxu0 0
    %112 = vmatprep.subr.bf16.mxu0 0
    %113 = vmatpush1.bf16.msra.mxu0 0
    %114 = vmatprep.subr.bf16.mxu0 0
    %115 = vmatpush1.bf16.msra.mxu0 0
    %116 = vmatprep.subr.bf16.mxu0 0
    %117 = vmatpush1.bf16.msra.mxu0 0
    %118 = vmatprep.subr.bf16.mxu0 0
    %119 = vmatpush1.bf16.msra.mxu0 0
    %120 = vmatprep.subr.bf16.mxu0 0
    %121 = vmatpush1.bf16.msra.mxu0 0
    %122 = vmatprep.mubr.bf16.mxu0 0
    %123 = vmatmul.mubr.bf16.gmra.mrb[0].mxu0 %v88
    %v124 = vpop.f32.mrb[0].mxu0
    %v125 = vadd.f32 %v72, %v124
    %v126 = vpop.f32.mrb[0].mxu0
    %v127 = vpop.f32.mrb[0].mxu0
    %v128 = vpop.f32.mrb[0].mxu0
    %129 = vdwg.mxu0
    %v130 = vmax.f32 %v125, 0.0
    %v131 = vpack.c.bf16 %v130, %v130
    %v132 = vld [vmem:[%s3] sm:$0xf]
    %v133 = vld [vmem:[%s3 + $0x4] sm:$0xf]
    %v134 = vld [vmem:[%s3 + $0x8] sm:$0xf]
    %v135 = vld [vmem:[%s3 + $0xc] sm:$0xf]
    %v136 = vld [vmem:[%s3 + $0x10] sm:$0xf]
    %v137 = vld [vmem:[%s3 + $0x14] sm:$0xf]
    %v138 = vld [vmem:[%s3 + $0x18] sm:$0xf]
    %v139 = vld [vmem:[%s3 + $0x1c] sm:$0xf]
    %v140 = vld [vmem:[%s3 + $0x20] sm:$0xf]
    %v141 = vld [vmem:[%s3 + $0x24] sm:$0xf]
    %v142 = vld [vmem:[%s3 + $0x28] sm:$0xf]
    %v143 = vld [vmem:[%s3 + $0x2c] sm:$0xf]
    %v144 = vld [vmem:[%s3 + $0x30] sm:$0xf]
    %v145 = vld [vmem:[%s3 + $0x34] sm:$0xf]
    %v146 = vld [vmem:[%s3 + $0x38] sm:$0xf]
    %v147 = vld [vmem:[%s3 + $0x3c] sm:$0xf]
    %v148 = vld [vmem:[%s4] sm:$0x1]
    %v150 = vlaneseq
    %v151 = vshrl.u32 %v150, 7
    %v152 = vsub.s32 0, %v151
    %v153 = vrot.slane %v148, %v152
    %v171 = vunpack.c.l.b16 %v132
    %v172 = vunpack.c.l.b16 %v133
    %v173 = vunpack.c.l.b16 %v134
    %v174 = vunpack.c.l.b16 %v135
    %v175 = vunpack.c.l.b16 %v136
    %v176 = vunpack.c.l.b16 %v137
    %v177 = vunpack.c.l.b16 %v138
    %v178 = vunpack.c.l.b16 %v139
    %v179 = vunpack.c.l.b16 %v140
    %v180 = vunpack.c.l.b16 %v141
    %v181 = vunpack.c.l.b16 %v142
    %v182 = vunpack.c.l.b16 %v143
    %v183 = vunpack.c.l.b16 %v144
    %v184 = vunpack.c.l.b16 %v145
    %v185 = vunpack.c.l.b16 %v146
    %v186 = vunpack.c.l.b16 %v147
    %v187 = vpack.c.b16 %v172, %v171
    %v188 = vpack.c.b16 %v174, %v173
    %v189 = vpack.c.b16 %v176, %v175
    %v190 = vpack.c.b16 %v178, %v177
    %v191 = vpack.c.b16 %v180, %v179
    %v192 = vpack.c.b16 %v182, %v181
    %v193 = vpack.c.b16 %v184, %v183
    %v194 = vpack.c.b16 %v186, %v185
    %203 = vmatprep.subr.bf16.mxu0 0
    %204 = vmatpush1.bf16.msra.mxu0 %v187
    %205 = vmatprep.subr.bf16.mxu0 0
    %206 = vmatpush1.bf16.msra.mxu0 %v188
    %207 = vmatprep.subr.bf16.mxu0 0
    %208 = vmatpush1.bf16.msra.mxu0 %v189
    %209 = vmatprep.subr.bf16.mxu0 0
    %210 = vmatpush1.bf16.msra.mxu0 %v190
    %211 = vmatprep.subr.bf16.mxu0 0
    %212 = vmatpush1.bf16.msra.mxu0 %v191
    %213 = vmatprep.subr.bf16.mxu0 0
    %214 = vmatpush1.bf16.msra.mxu0 %v192
    %215 = vmatprep.subr.bf16.mxu0 0
    %216 = vmatpush1.bf16.msra.mxu0 %v193
    %217 = vmatprep.subr.bf16.mxu0 0
    %218 = vmatpush1.bf16.msra.mxu0 %v194
    %219 = vmatprep.subr.bf16.mxu0 0
    %220 = vmatpush1.bf16.msra.mxu0 0
    %221 = vmatprep.subr.bf16.mxu0 0
    %222 = vmatpush1.bf16.msra.mxu0 0
    %223 = vmatprep.subr.bf16.mxu0 0
    %224 = vmatpush1.bf16.msra.mxu0 0
    %225 = vmatprep.subr.bf16.mxu0 0
    %226 = vmatpush1.bf16.msra.mxu0 0
    %227 = vmatprep.subr.bf16.mxu0 0
    %228 = vmatpush1.bf16.msra.mxu0 0
    %229 = vmatprep.subr.bf16.mxu0 0
    %230 = vmatpush1.bf16.msra.mxu0 0
    %231 = vmatprep.subr.bf16.mxu0 0
    %232 = vmatpush1.bf16.msra.mxu0 0
    %233 = vmatprep.subr.bf16.mxu0 0
    %234 = vmatpush1.bf16.msra.mxu0 0
    %235 = vmatprep.mubr.bf16.mxu0 0
    %236 = vmatmul.mubr.bf16.gmra.mrb[0].mxu0 %v131
    %v237 = vpop.f32.mrb[0].mxu0
    %v238 = vadd.f32 %v153, %v237
    %v239 = vpop.f32.mrb[0].mxu0
    %v240 = vpop.f32.mrb[0].mxu0
    %v241 = vpop.f32.mrb[0].mxu0
    %242 = vdwg.mxu0
    %v243 = vmax.f32 %v238, 0.0
    %v244 = vpack.c.bf16 %v243, %v243
    %v245 = vld [vmem:[#allocation4] sm:$0xf]
    %v246 = vld [vmem:[#allocation4 + $0x4] sm:$0xf]
    %v247 = vld [vmem:[#allocation4 + $0x8] sm:$0xf]
    %v248 = vld [vmem:[#allocation4 + $0xc] sm:$0xf]
    %v249 = vld [vmem:[#allocation4 + $0x10] sm:$0xf]
    %v250 = vld [vmem:[#allocation4 + $0x14] sm:$0xf]
    %v251 = vld [vmem:[#allocation4 + $0x18] sm:$0xf]
    %v252 = vld [vmem:[#allocation4 + $0x1c] sm:$0xf]
    %v253 = vld [vmem:[#allocation4 + $0x20] sm:$0xf]
    %v254 = vld [vmem:[#allocation4 + $0x24] sm:$0xf]
    %v255 = vld [vmem:[#allocation4 + $0x28] sm:$0xf]
    %v256 = vld [vmem:[#allocation4 + $0x2c] sm:$0xf]
    %v257 = vld [vmem:[#allocation4 + $0x30] sm:$0xf]
    %v258 = vld [vmem:[#allocation4 + $0x34] sm:$0xf]
    %v259 = vld [vmem:[#allocation4 + $0x38] sm:$0xf]
    %v260 = vld [vmem:[#allocation4 + $0x3c] sm:$0xf]
    %v261 = vld [vmem:[%s6] sm:$0x1]
    %v263 = vlaneseq
    %v264 = vshrl.u32 %v263, 7
    %v265 = vsub.s32 0, %v264
    %v266 = vrot.slane %v261, %v265
    %v284 = vunpack.c.l.b16 %v245
    %v285 = vunpack.c.l.b16 %v246
    %v286 = vunpack.c.l.b16 %v247
    %v287 = vunpack.c.l.b16 %v248
    %v288 = vunpack.c.l.b16 %v249
    %v289 = vunpack.c.l.b16 %v250
    %v290 = vunpack.c.l.b16 %v251
    %v291 = vunpack.c.l.b16 %v252
    %v292 = vunpack.c.l.b16 %v253
    %v293 = vunpack.c.l.b16 %v254
    %v294 = vunpack.c.l.b16 %v255
    %v295 = vunpack.c.l.b16 %v256
    %v296 = vunpack.c.l.b16 %v257
    %v297 = vunpack.c.l.b16 %v258
    %v298 = vunpack.c.l.b16 %v259
    %v299 = vunpack.c.l.b16 %v260
    %v300 = vpack.c.b16 %v285, %v284
    %v301 = vpack.c.b16 %v287, %v286
    %v302 = vpack.c.b16 %v289, %v288
    %v303 = vpack.c.b16 %v291, %v290
    %v304 = vpack.c.b16 %v293, %v292
    %v305 = vpack.c.b16 %v295, %v294
    %v306 = vpack.c.b16 %v297, %v296
    %v307 = vpack.c.b16 %v299, %v298
    %316 = vmatprep.subr.bf16.mxu0 0
    %317 = vmatpush1.bf16.msra.mxu0 %v300
    %318 = vmatprep.subr.bf16.mxu0 0
    %319 = vmatpush1.bf16.msra.mxu0 %v301
    %320 = vmatprep.subr.bf16.mxu0 0
    %321 = vmatpush1.bf16.msra.mxu0 %v302
    %322 = vmatprep.subr.bf16.mxu0 0
    %323 = vmatpush1.bf16.msra.mxu0 %v303
    %324 = vmatprep.subr.bf16.mxu0 0
    %325 = vmatpush1.bf16.msra.mxu0 %v304
    %326 = vmatprep.subr.bf16.mxu0 0
    %327 = vmatpush1.bf16.msra.mxu0 %v305
    %328 = vmatprep.subr.bf16.mxu0 0
    %329 = vmatpush1.bf16.msra.mxu0 %v306
    %330 = vmatprep.subr.bf16.mxu0 0
    %331 = vmatpush1.bf16.msra.mxu0 %v307
    %332 = vmatprep.subr.bf16.mxu0 0
    %333 = vmatpush1.bf16.msra.mxu0 0
    %334 = vmatprep.subr.bf16.mxu0 0
    %335 = vmatpush1.bf16.msra.mxu0 0
    %336 = vmatprep.subr.bf16.mxu0 0
    %337 = vmatpush1.bf16.msra.mxu0 0
    %338 = vmatprep.subr.bf16.mxu0 0
    %339 = vmatpush1.bf16.msra.mxu0 0
    %340 = vmatprep.subr.bf16.mxu0 0
    %341 = vmatpush1.bf16.msra.mxu0 0
    %342 = vmatprep.subr.bf16.mxu0 0
    %343 = vmatpush1.bf16.msra.mxu0 0
    %344 = vmatprep.subr.bf16.mxu0 0
    %345 = vmatpush1.bf16.msra.mxu0 0
    %346 = vmatprep.subr.bf16.mxu0 0
    %347 = vmatpush1.bf16.msra.mxu0 0
    %348 = vmatprep.mubr.bf16.mxu0 0
    %349 = vmatmul.mubr.bf16.gmra.mrb[0].mxu0 %v244
    %v350 = vpop.f32.mrb[0].mxu0
    %v351 = vadd.f32 %v266, %v350
    %v352 = vpop.f32.mrb[0].mxu0
    %v353 = vpop.f32.mrb[0].mxu0
    %v354 = vpop.f32.mrb[0].mxu0
    %355 = vdwg.mxu0
    %v356 = vmax.f32 %v351, 0.0
    %v357 = vpack.c.bf16 %v356, %v356
    %v358 = vld [vmem:[%s7] sm:$0xf]
    %v359 = vld [vmem:[%s7 + $0x4] sm:$0xf]
    %v360 = vld [vmem:[%s7 + $0x8] sm:$0xf]
    %v361 = vld [vmem:[%s7 + $0xc] sm:$0xf]
    %v362 = vld [vmem:[%s7 + $0x10] sm:$0xf]
    %v363 = vld [vmem:[%s7 + $0x14] sm:$0xf]
    %v364 = vld [vmem:[%s7 + $0x18] sm:$0xf]
    %v365 = vld [vmem:[%s7 + $0x1c] sm:$0xf]
    %v366 = vld [vmem:[%s7 + $0x20] sm:$0xf]
    %v367 = vld [vmem:[%s7 + $0x24] sm:$0xf]
    %v368 = vld [vmem:[%s7 + $0x28] sm:$0xf]
    %v369 = vld [vmem:[%s7 + $0x2c] sm:$0xf]
    %v370 = vld [vmem:[%s7 + $0x30] sm:$0xf]
    %v371 = vld [vmem:[%s7 + $0x34] sm:$0xf]
    %v372 = vld [vmem:[%s7 + $0x38] sm:$0xf]
    %v373 = vld [vmem:[%s7 + $0x3c] sm:$0xf]
    %v374 = vld [vmem:[%s8] sm:$0x1]
    %v376 = vlaneseq
    %v377 = vshrl.u32 %v376, 7
    %v378 = vsub.s32 0, %v377
    %v379 = vrot.slane %v374, %v378
    %v397 = vunpack.c.l.b16 %v358
    %v398 = vunpack.c.l.b16 %v359
    %v399 = vunpack.c.l.b16 %v360
    %v400 = vunpack.c.l.b16 %v361
    %v401 = vunpack.c.l.b16 %v362
    %v402 = vunpack.c.l.b16 %v363
    %v403 = vunpack.c.l.b16 %v364
    %v404 = vunpack.c.l.b16 %v365
    %v405 = vunpack.c.l.b16 %v366
    %v406 = vunpack.c.l.b16 %v367
    %v407 = vunpack.c.l.b16 %v368
    %v408 = vunpack.c.l.b16 %v369
    %v409 = vunpack.c.l.b16 %v370
    %v410 = vunpack.c.l.b16 %v371
    %v411 = vunpack.c.l.b16 %v372
    %v412 = vunpack.c.l.b16 %v373
    %v413 = vpack.c.b16 %v398, %v397
    %v414 = vpack.c.b16 %v400, %v399
    %v415 = vpack.c.b16 %v402, %v401
    %v416 = vpack.c.b16 %v404, %v403
    %v417 = vpack.c.b16 %v406, %v405
    %v418 = vpack.c.b16 %v408, %v407
    %v419 = vpack.c.b16 %v410, %v409
    %v420 = vpack.c.b16 %v412, %v411
    %429 = vmatprep.subr.bf16.mxu0 0
    %430 = vmatpush1.bf16.msra.mxu0 %v413
    %431 = vmatprep.subr.bf16.mxu0 0
    %432 = vmatpush1.bf16.msra.mxu0 %v414
    %433 = vmatprep.subr.bf16.mxu0 0
    %434 = vmatpush1.bf16.msra.mxu0 %v415
    %435 = vmatprep.subr.bf16.mxu0 0
    %436 = vmatpush1.bf16.msra.mxu0 %v416
    %437 = vmatprep.subr.bf16.mxu0 0
    %438 = vmatpush1.bf16.msra.mxu0 %v417
    %439 = vmatprep.subr.bf16.mxu0 0
    %440 = vmatpush1.bf16.msra.mxu0 %v418
    %441 = vmatprep.subr.bf16.mxu0 0
    %442 = vmatpush1.bf16.msra.mxu0 %v419
    %443 = vmatprep.subr.bf16.mxu0 0
    %444 = vmatpush1.bf16.msra.mxu0 %v420
    %445 = vmatprep.subr.bf16.mxu0 0
    %446 = vmatpush1.bf16.msra.mxu0 0
    %447 = vmatprep.subr.bf16.mxu0 0
    %448 = vmatpush1.bf16.msra.mxu0 0
    %449 = vmatprep.subr.bf16.mxu0 0
    %450 = vmatpush1.bf16.msra.mxu0 0
    %451 = vmatprep.subr.bf16.mxu0 0
    %452 = vmatpush1.bf16.msra.mxu0 0
    %453 = vmatprep.subr.bf16.mxu0 0
    %454 = vmatpush1.bf16.msra.mxu0 0
    %455 = vmatprep.subr.bf16.mxu0 0
    %456 = vmatpush1.bf16.msra.mxu0 0
    %457 = vmatprep.subr.bf16.mxu0 0
    %458 = vmatpush1.bf16.msra.mxu0 0
    %459 = vmatprep.subr.bf16.mxu0 0
    %460 = vmatpush1.bf16.msra.mxu0 0
    %461 = vmatprep.mubr.bf16.mxu0 0
    %462 = vmatmul.mubr.bf16.gmra.mrb[0].mxu0 %v357
    %v463 = vpop.f32.mrb[0].mxu0
    %v464 = vadd.f32 %v379, %v463
    %v465 = vpop.f32.mrb[0].mxu0
    %v466 = vpop.f32.mrb[0].mxu0
    %v467 = vpop.f32.mrb[0].mxu0
    %468 = vdwg.mxu0
    %vm469 = vcmask 31744
    %470 = vst.msk [vmem:[%s9] sm:$0xff] %vm469, %v464
    // Predicated region
    $region46: #{tpu_custom_call.1} parent=1 // pred_check
      _
    $region47: #{tpu_custom_call.1} parent=1 // pred_check_branch
      %472 = sbr.rel (0) target = $region49
    $region48: #{tpu_custom_call.1} parent=1 // pred_region
      _
    $region49: #{tpu_custom_call.1} parent=1 // pred_fallthru
      _
    // Predicated region
    $region50: #{tpu_custom_call.1} parent=1 // pred_check
      _
    $region51: #{tpu_custom_call.1} parent=1 // pred_check_branch
      %474 = sbr.rel (0) target = $region53
    $region52: #{tpu_custom_call.1} parent=1 // pred_region
      _
    $region53: #{tpu_custom_call.1} parent=1 // pred_fallthru
      _
    %475 = vsyncpa [#allocation3], 1
    %476 = vsyncpa [#allocation5], 1

</llo_original>
